<compile_context>
chip_gen: v7x
topology: tpu7x:2x2x1
jax: 0.10.0
libtpu: 0.0.40
codegen_flags: <defaults>
</compile_context>

<pallas_src>
import functools

import jax
import jax.numpy as jnp
from jax.experimental import pallas as pl
from jax.experimental.pallas import tpu as pltpu


def _round_up(x, m):
    return ((x + m - 1) // m) * m


def _vmem_capacity_bytes():
    try:
        return int(pltpu.get_tpu_info().vmem_capacity_bytes)
    except Exception:
        return 64 * 1024 * 1024          # conservative fallback (v7x per-TensorCore VMEM)


_VMEM_CAP = _vmem_capacity_bytes()
_VMEM_LIMIT = int(min(_VMEM_CAP * 0.85, 112 * 1024 * 1024))    # scoped-VMEM limit requested
_TILE_BUDGET = int(min(_VMEM_CAP * 0.55, 72 * 1024 * 1024))    # per-step working-set target
_FUSED_BUDGET = int(min(_VMEM_CAP * 0.25, 20 * 1024 * 1024))   # single-pass fast-path cap

_CPARAMS_1D = pltpu.CompilerParams(dimension_semantics=("arbitrary",),
                                   vmem_limit_bytes=_VMEM_LIMIT)
_CPARAMS_2D = pltpu.CompilerParams(dimension_semantics=("parallel", "parallel"),
                                   vmem_limit_bytes=_VMEM_LIMIT)


# ----------------------------------------------------------------------------
# Pallas kernels
# ----------------------------------------------------------------------------
def _fused_conv_bn_act_kernel(*refs, num_phases, normalize, slope, eps, m_true):
    """Single-pass path: conv matmul + BN batch stats + normalize + activation.

    refs (normalize=True):  p_ref (P,K,M) bf16, w_ref (P,Cout,K) bf16,
                            g_ref (Cout,1) f32, b_ref (Cout,1) f32, o_ref (P,Cout,M) f32
    refs (normalize=False): p_ref, w_ref, o_ref
    """
    if normalize:
        p_ref, w_ref, g_ref, b_ref, o_ref = refs
    else:
        p_ref, w_ref, o_ref = refs

    # MXU matmuls, f32 accumulation. All phases stay resident (small-problem path only).
    ys = [jnp.dot(w_ref[ph], p_ref[ph], preferred_element_type=jnp.float32)
          for ph in range(num_phases)]

    scale = shift = None
    if normalize:
        ssum = ys[0].sum(axis=1, keepdims=True)            # (Cout, 1), f32
        ssq = (ys[0] * ys[0]).sum(axis=1, keepdims=True)   # (Cout, 1), f32
        for y in ys[1:]:
            ssum = ssum + y.sum(axis=1, keepdims=True)
            ssq = ssq + (y * y).sum(axis=1, keepdims=True)
        mean = ssum / m_true
        var = jnp.maximum(ssq / m_true - mean * mean, 0.0)
        scale = g_ref[...] * jax.lax.rsqrt(var + eps)      # (Cout, 1)
        shift = b_ref[...] - mean * scale                  # (Cout, 1)

    for ph in range(num_phases):
        z = ys[ph] * scale + shift if normalize else ys[ph]
        o_ref[ph] = jnp.where(z >= 0.0, z, slope * z).astype(o_ref.dtype)


def _conv_stats_kernel(p_ref, w_ref, y_ref, s_ref):
    """(Cout, K) @ (K, TILE_M) on the MXU + per-tile BatchNorm partial stats.

    p_ref : (K, TILE_M)    bf16 patch tile (lane axis = M, lane-dense)
    w_ref : (Cout, K)      bf16 weights (per phase)
    y_ref : (Cout, TILE_M) bf16 conv-output tile (demoted HBM intermediate)
    s_ref : (Cout, 2)      f32  [row-sum | row-sum-of-squares] of this tile
    """
    y = jnp.dot(w_ref[...], p_ref[...], preferred_element_type=jnp.float32)
    y_ref[...] = y.astype(y_ref.dtype)
    # Stats from the f32 accumulator (NOT the bf16 HBM copy); two direct stores.
    s_ref[:, 0:1] = jnp.sum(y, axis=1, keepdims=True)
    s_ref[:, 1:2] = jnp.sum(y * y, axis=1, keepdims=True)


def _norm_act_kernel(y_ref, sc_ref, sh_ref, o_ref, *, slope):
    """Folded BatchNorm (exactly one FMA) + LeakyReLU(slope) (slope=0 -> ReLU)."""
    y = y_ref[...].astype(jnp.float32) * sc_ref[...] + sh_ref[...]
    o_ref[...] = jnp.where(y >= 0.0, y, slope * y).astype(o_ref.dtype)


# ----------------------------------------------------------------------------
# Fused conv-as-matmul + BatchNorm(batch stats) + activation
# ----------------------------------------------------------------------------
def _conv_bn_act(patches, weights, gamma, beta, *, normalize, slope, eps,
                 force_two_pass=False):
    """patches: (P, K, M) bf16, weights: (P, Cout, K) bf16 -> (P, Cout, M) f32.

    Channel-major output so the lane (last) axis carries M (lane-dense stores).
    """
    P, K, M = patches.shape
    Cout = weights.shape[1]
    m_true = float(P * M)

    g2d = gamma.reshape(Cout, 1).astype(jnp.float32)
    b2d = beta.reshape(Cout, 1).astype(jnp.float32)

    # ---- single-pass fast path: everything stays in VMEM, one HBM write ----
    fused_bytes = (P * K * M * 2 + P * Cout * K * 2        # bf16 inputs
                   + 2 * P * Cout * M * 4)                 # f32 live conv + output
    if (not force_two_pass) and fused_bytes <= _FUSED_BUDGET:
        kern = functools.partial(_fused_conv_bn_act_kernel, num_phases=P,
                                 normalize=normalize, slope=slope, eps=eps,
                                 m_true=m_true)
        in_specs = [pl.BlockSpec((P, K, M), lambda i: (0, 0, 0)),
                    pl.BlockSpec((P, Cout, K), lambda i: (0, 0, 0))]
        args = [patches, weights]
        if normalize:
            in_specs += [pl.BlockSpec((Cout, 1), lambda i: (0, 0)),
                         pl.BlockSpec((Cout, 1), lambda i: (0, 0))]
            args += [g2d, b2d]
        return pl.pallas_call(
            kern,
            grid=(1,),
            in_specs=in_specs,
            out_specs=pl.BlockSpec((P, Cout, M), lambda i: (0, 0, 0)),
            out_shape=jax.ShapeDtypeStruct((P, Cout, M), jnp.float32),
            compiler_params=_CPARAMS_1D,
        )(*args)

    # ---- two-pass tiled path (large layers) ----
    # Pass-1 tile: biggest lane-dense TILE_M whose double-buffered working set fits the
    # budget (budget derived from actual VMEM capacity: 64 MiB v7x vs 128 MiB v5e/v6e).
    denom = 4 * (K + Cout)               # 2 bufs x bf16 x (patch col + y col) bytes per M
    fixed = 4 * K * Cout                 # 2 bufs x bf16 weight block
    tile_m = (_TILE_BUDGET - fixed) // max(denom, 1)
    tile_m = max(128, min(int(tile_m), 2048, _round_up(M, 128)))
    tile_m = (tile_m // 128) * 128
    # Keep >= 2 parallel grid tiles where possible (v7x has 2 TensorCores).
    if P * (_round_up(M, tile_m) // tile_m) < 2 and tile_m > 128:
        tile_m = max(128, ((tile_m // 2) // 128) * 128)
    m_pad = _round_up(M, tile_m)
    if m_pad != M:
        # Zero columns -> zero conv output -> zero contribution to the BN partial sums.
        patches = jnp.pad(patches, ((0, 0), (0, 0), (0, m_pad - M)))
    nt = m_pad // tile_m

    conv_out, stats = pl.pallas_call(
        _conv_stats_kernel,
        grid=(P, nt),
        in_specs=[
            pl.BlockSpec((None, K, tile_m), lambda p, i: (p, 0, i)),
            pl.BlockSpec((None, Cout, K), lambda p, i: (p, 0, 0)),
        ],
        out_specs=[
            pl.BlockSpec((None, Cout, tile_m), lambda p, i: (p, 0, i)),
            pl.BlockSpec((None, None, Cout, 2), lambda p, i: (p, i, 0, 0)),
        ],
        out_shape=[
            jax.ShapeDtypeStruct((P, Cout, m_pad), jnp.bfloat16),   # bf16 intermediate
            jax.ShapeDtypeStruct((P, nt, Cout, 2), jnp.float32),
        ],
        compiler_params=_CPARAMS_2D,
    )(patches, weights)

    # Tiny per-channel reduction + BN folding into (scale, shift) in plain JAX.
    if normalize:
        ssum = jnp.sum(stats[..., 0], axis=(0, 1))        # (Cout,)
        ssq = jnp.sum(stats[..., 1], axis=(0, 1))         # (Cout,)
        mean = ssum / m_true
        var = jnp.maximum(ssq / m_true - mean * mean, 0.0)
        scale = gamma.astype(jnp.float32) * jax.lax.rsqrt(var + eps)
        shift = beta.astype(jnp.float32) - mean * scale
    else:
        scale = jnp.ones((Cout,), jnp.float32)
        shift = jnp.zeros((Cout,), jnp.float32)

    # Pass-2 streaming tile: decoupled from pass 1 (no K operand -> much bigger tiles).
    f = 1
    for cand in range(nt, 0, -1):
        if nt % cand == 0 and 2 * Cout * tile_m * cand * (2 + 4) <= _TILE_BUDGET:
            f = cand
            break
    tile_m2 = tile_m * f
    nt2 = m_pad // tile_m2

    out = pl.pallas_call(
        functools.partial(_norm_act_kernel, slope=slope),
        grid=(P, nt2),
        in_specs=[
            pl.BlockSpec((None, Cout, tile_m2), lambda p, i: (p, 0, i)),
            pl.BlockSpec((Cout, 1), lambda p, i: (0, 0)),
            pl.BlockSpec((Cout, 1), lambda p, i: (0, 0)),
        ],
        out_specs=pl.BlockSpec((None, Cout, tile_m2), lambda p, i: (p, 0, i)),
        out_shape=jax.ShapeDtypeStruct((P, Cout, m_pad), jnp.float32),
        compiler_params=_CPARAMS_2D,
    )(conv_out, scale.reshape(Cout, 1), shift.reshape(Cout, 1))

    return out[:, :, :M]


# ----------------------------------------------------------------------------
# Layout glue (plain JAX): im2col for the down conv, phase taps for the up conv
# ----------------------------------------------------------------------------
def _im2col_T(x_pad, Ho, Wo, k, stride):
    """x_pad: (N, Cin, Hp, Wp) -> (Cin*k*k, N*Ho*Wo); rows ordered (cin, kh, kw)."""
    N, Cin = x_pad.shape[0], x_pad.shape[1]
    cols = []
    for kh in range(k):
        for kw in range(k):
            cols.append(
                x_pad[:, :, kh:kh + stride * Ho:stride, kw:kw + stride * Wo:stride])
    p = jnp.stack(cols, axis=2)              # (N, Cin, k*k, Ho, Wo)
    p = p.transpose(1, 2, 0, 3, 4)           # (Cin, k*k, N, Ho, Wo)
    return p.reshape(Cin * k * k, N * Ho * Wo)


# ----------------------------------------------------------------------------
# UNetBlock forward (down / up)
# ----------------------------------------------------------------------------
def unet_block_down(x, w, gamma, beta, *, normalize=True, eps=0.8, slope=0.2,
                    force_two_pass=False):
    """x: (N, Cin, H, W);  w: (Cout, Cin, 4, 4)  [Conv2d weight layout]."""
    N, Cin, H, W = x.shape
    Cout = w.shape[0]
    Ho, Wo = H // 2, W // 2
    x_pad = jnp.pad(x, ((0, 0), (0, 0), (1, 1), (1, 1))).astype(jnp.bfloat16)
    patches = _im2col_T(x_pad, Ho, Wo, 4, 2)                     # (K, M) bf16
    w2d = w.reshape(Cout, Cin * 16).astype(jnp.bfloat16)         # (Cout, K)
    y = _conv_bn_act(patches[None], w2d[None],
                     gamma.astype(jnp.float32), beta.astype(jnp.float32),
                     normalize=normalize, slope=slope, eps=eps,
                     force_two_pass=force_two_pass)              # (1, Cout, M)
    # TODO(synk): keep channel-major layout end-to-end to drop this NCHW relayout pass.
    return y[0].reshape(Cout, N, Ho, Wo).transpose(1, 0, 2, 3)


def unet_block_up(x, w_t, gamma, beta, skip_input=None, *, normalize=True, eps=0.8,
                  force_two_pass=False):
    """x: (N, Cin, H, W);  w_t: (Cin, Cout, 4, 4)  [ConvTranspose2d weight layout].

    ConvTranspose2d(4, s=2, p=1) via sub-pixel decomposition: output phase
    (ph, pw) = (oh%2, ow%2) only touches flipped-kernel taps (kh, kw) = (ph+2a, pw+2b),
    each at input pixel (i+ph+a-1, j+pw+b-1) -> four independent 2x2-tap convolutions.
    """
    N, Cin, H, W = x.shape
    Cout = w_t.shape[1]
    w_conv = jnp.flip(w_t, axis=(2, 3)).transpose(1, 0, 2, 3)    # (Cout, Cin, 4, 4)
    x_p = jnp.pad(x, ((0, 0), (0, 0), (1, 1), (1, 1))).astype(jnp.bfloat16)
    Mp = N * H * W

    patch_phases, w_phases = [], []
    for ph in range(2):
        for pw in range(2):
            taps, wtaps = [], []
            for a in range(2):
                for b in range(2):
                    taps.append(x_p[:, :, ph + a:ph + a + H, pw + b:pw + b + W])
                    wtaps.append(w_conv[:, :, ph + 2 * a, pw + 2 * b])   # (Cout, Cin)
            pm = jnp.stack(taps, axis=0)                            # (4, N, Cin, H, W)
            pm = pm.transpose(0, 2, 1, 3, 4).reshape(4 * Cin, Mp)   # rows (ab, cin)
            wm = jnp.stack(wtaps, axis=1).reshape(Cout, 4 * Cin)    # cols (ab, cin)
            patch_phases.append(pm)
            w_phases.append(wm)
    patches = jnp.stack(patch_phases, axis=0)                    # (4, 4*Cin, Mp) bf16
    weights = jnp.stack(w_phases, axis=0).astype(jnp.bfloat16)   # (4, Cout, 4*Cin)

    y_ph = _conv_bn_act(patches, weights,
                        gamma.astype(jnp.float32), beta.astype(jnp.float32),
                        normalize=normalize, slope=0.0, eps=eps,
                        force_two_pass=force_two_pass)           # (4, Cout, Mp)

    # Re-interleave phases: out[n, c, 2i+ph, 2j+pw] = y_ph[2*ph+pw, c, n*H*W + i*W + j]
    y = (y_ph.reshape(2, 2, Cout, N, H, W)
         .transpose(3, 2, 4, 0, 5, 1)
         .reshape(N, Cout, 2 * H, 2 * W))
    if skip_input is not None:
        # TODO(synk): fuse the concat into the pass-2 output BlockSpec to save one pass.
        y = jnp.concatenate([y, skip_input.astype(y.dtype)], axis=1)  # torch.cat((x, skip), 1)
    return y


# ----------------------------------------------------------------------------
# Pure-JAX references (correctness checks only)
# ----------------------------------------------------------------------------
def _act_ref(y, slope):
    return jnp.where(y >= 0, y, slope * y)


def _bn_act_ref(y, gamma, beta, eps, slope):
    mean = y.mean(axis=(0, 2, 3), keepdims=True)
    var = jnp.mean(jnp.square(y - mean), axis=(0, 2, 3), keepdims=True)
    y = (y - mean) * jax.lax.rsqrt(var + eps)
    y = y * gamma.reshape(1, -1, 1, 1) + beta.reshape(1, -1, 1, 1)
    return _act_ref(y, slope)


def _ref_down(x, w, gamma, beta, eps=0.8, slope=0.2, normalize=True):
    y = jax.lax.conv_general_dilated(x, w, window_strides=(2, 2),
                                     padding=((1, 1), (1, 1)),
                                     dimension_numbers=('NCHW', 'OIHW', 'NCHW'))
    return _bn_act_ref(y, gamma, beta, eps, slope) if normalize else _act_ref(y, slope)


def _ref_up(x, w_t, gamma, beta, skip, eps=0.8):
    w_conv = jnp.flip(w_t, axis=(2, 3)).transpose(1, 0, 2, 3)
    y = jax.lax.conv_general_dilated(x, w_conv, window_strides=(1, 1),
                                     padding=((2, 2), (2, 2)),
                                     lhs_dilation=(2, 2),
                                     dimension_numbers=('NCHW', 'OIHW', 'NCHW'))
    y = _bn_act_ref(y, gamma, beta, eps, 0.0)
    return jnp.concatenate([y, skip], axis=1)


# ----------------------------------------------------------------------------
if __name__ == "__main__":
    key = jax.random.PRNGKey(0)
    k_x, k_wd, k_wu, k_g1, k_b1, k_g2, k_b2 = jax.random.split(key, 7)

    N, Cin, H, W = 2, 4, 16, 16
    C_down = 8        # down block:  Conv2d(4 -> 8)
    C_up = 4          # up block:    ConvTranspose2d(8 -> 4), then concat skip(4) -> 8

    x = jax.random.normal(k_x, (N, Cin, H, W), dtype=jnp.float32)

    w_down = 0.1 * jax.random.normal(k_wd, (C_down, Cin, 4, 4), dtype=jnp.float32)
    g_down = 1.0 + 0.1 * jax.random.normal(k_g1, (C_down,), dtype=jnp.float32)
    b_down = 0.1 * jax.random.normal(k_b1, (C_down,), dtype=jnp.float32)

    w_up = 0.1 * jax.random.normal(k_wu, (C_down, C_up, 4, 4), dtype=jnp.float32)
    g_up = 1.0 + 0.1 * jax.random.normal(k_g2, (C_up,), dtype=jnp.float32)
    b_up = 0.1 * jax.random.normal(k_b2, (C_up,), dtype=jnp.float32)

    tol = dict(atol=2.5e-2, rtol=2.5e-2)   # bf16 matmul operands -> relaxed tolerance

    # ---- down block (is_down=True), single-pass fused path ----
    y_down = jax.block_until_ready(unet_block_down(x, w_down, g_down, b_down))
    assert y_down.shape == (N, C_down, H // 2, W // 2)
    ref_down = _ref_down(x, w_down, g_down, b_down)
    assert jnp.allclose(y_down, ref_down, **tol)

    # ---- up block (is_down=False) with skip connection, single-pass fused path ----
    skip = x  # (2, 4, 16, 16)
    y_up = jax.block_until_ready(
        unet_block_up(y_down, w_up, g_up, b_up, skip_input=skip))
    assert y_up.shape == (N, C_up + Cin, H, W)
    ref_up = _ref_up(y_down, w_up, g_up, b_up, skip)
    assert jnp.allclose(y_up, ref_up, **tol)

    # ---- also exercise the two-pass tiled path (bf16 HBM intermediate) ----
    y_down2 = jax.block_until_ready(
        unet_block_down(x, w_down, g_down, b_down, force_two_pass=True))
    assert jnp.allclose(y_down2, ref_down, **tol)
    y_up2 = jax.block_until_ready(
        unet_block_up(y_down, w_up, g_up, b_up, skip_input=skip, force_two_pass=True))
    assert jnp.allclose(y_up2, ref_up, **tol)

    # ---- normalize=False branch ----
    y_nn = jax.block_until_ready(
        unet_block_down(x, w_down, g_down, b_down, normalize=False))
    assert jnp.allclose(
        y_nn, _ref_down(x, w_down, g_down, b_down, normalize=False), **tol)

    print("KERNEL_OK")
</pallas_src>

<mosaic_0001>
module attributes {stable_mosaic.version = 11 : i64} {
  func.func @_fused_conv_bn_act_kernel(%arg0: i32, %arg1: memref<1x64x128xbf16, #tpu.memory_space<vmem>>, %arg2: memref<1x8x64xbf16, #tpu.memory_space<vmem>>, %arg3: memref<8x1xf32, #tpu.memory_space<vmem>>, %arg4: memref<8x1xf32, #tpu.memory_space<vmem>>, %arg5: memref<1x8x128xf32, #tpu.memory_space<vmem>>) attributes {dimension_semantics = [#tpu.dimension_semantics<arbitrary>], iteration_bounds = array<i64: 1>, scalar_prefetch = 0 : i64, scratch_operands = 0 : i64, tpu.core_type = #tpu.core_type<tc>, window_params = [{pipeline_mode = #tpu.pipeline_mode<synchronous>, transform_indices = @transform_0, window_bounds = array<i64: 1, 64, 128>}, {pipeline_mode = #tpu.pipeline_mode<synchronous>, transform_indices = @transform_1, window_bounds = array<i64: 1, 8, 64>}, {pipeline_mode = #tpu.pipeline_mode<synchronous>, transform_indices = @transform_2, window_bounds = array<i64: 8, 1>}, {pipeline_mode = #tpu.pipeline_mode<synchronous>, transform_indices = @transform_3, window_bounds = array<i64: 8, 1>}, {pipeline_mode = #tpu.pipeline_mode<synchronous>, transform_indices = @transform_4, window_bounds = array<i64: 1, 8, 128>}]} {
    %c0 = arith.constant 0 : index
    %c0_0 = arith.constant 0 : index
    %c0_1 = arith.constant 0 : index
    %0 = vector.load %arg2[%c0, %c0_0, %c0_1] : memref<1x8x64xbf16, #tpu.memory_space<vmem>>, vector<1x8x64xbf16>
    %1 = vector.shape_cast %0 : vector<1x8x64xbf16> to vector<8x64xbf16>
    %c0_2 = arith.constant 0 : index
    %c0_3 = arith.constant 0 : index
    %c0_4 = arith.constant 0 : index
    %2 = vector.load %arg1[%c0_2, %c0_3, %c0_4] : memref<1x64x128xbf16, #tpu.memory_space<vmem>>, vector<1x64x128xbf16>
    %3 = vector.shape_cast %2 : vector<1x64x128xbf16> to vector<64x128xbf16>
    %cst = arith.constant dense<0.000000e+00> : vector<8x128xf32>
    %4 = tpu.matmul %1, %3, %cst {dimension_numbers = #tpu.dot_dimension_numbers<[1], [0], [0], [1], [0, 0, 1, 1], [], []>} : vector<8x64xbf16>, vector<64x128xbf16>, vector<8x128xf32> -> vector<8x128xf32>
    %cst_5 = arith.constant dense<0.000000e+00> : vector<8xf32>
    %5 = vector.multi_reduction <add>, %4, %cst_5 [1] : vector<8x128xf32> to vector<8xf32>
    %6 = vector.shape_cast %5 : vector<8xf32> to vector<8x1xf32>
    %7 = arith.mulf %4, %4 : vector<8x128xf32>
    %cst_6 = arith.constant dense<0.000000e+00> : vector<8xf32>
    %8 = vector.multi_reduction <add>, %7, %cst_6 [1] : vector<8x128xf32> to vector<8xf32>
    %9 = vector.shape_cast %8 : vector<8xf32> to vector<8x1xf32>
    %cst_7 = arith.constant 1.280000e+02 : f32
    %10 = vector.broadcast %cst_7 : f32 to vector<8x1xf32>
    %11 = arith.divf %6, %10 : vector<8x1xf32>
    %cst_8 = arith.constant 1.280000e+02 : f32
    %12 = vector.broadcast %cst_8 : f32 to vector<8x1xf32>
    %13 = arith.divf %9, %12 : vector<8x1xf32>
    %14 = arith.mulf %11, %11 : vector<8x1xf32>
    %15 = arith.subf %13, %14 : vector<8x1xf32>
    %cst_9 = arith.constant 0.000000e+00 : f32
    %16 = vector.broadcast %cst_9 : f32 to vector<8x1xf32>
    %17 = arith.maximumf %15, %16 : vector<8x1xf32>
    %c0_10 = arith.constant 0 : index
    %c0_11 = arith.constant 0 : index
    %18 = vector.load %arg3[%c0_10, %c0_11] : memref<8x1xf32, #tpu.memory_space<vmem>>, vector<8x1xf32>
    %cst_12 = arith.constant 8.000000e-01 : f32
    %19 = vector.broadcast %cst_12 : f32 to vector<8x1xf32>
    %20 = arith.addf %17, %19 : vector<8x1xf32>
    %21 = math.rsqrt %20 : vector<8x1xf32>
    %22 = arith.mulf %18, %21 : vector<8x1xf32>
    %c0_13 = arith.constant 0 : index
    %c0_14 = arith.constant 0 : index
    %23 = vector.load %arg4[%c0_13, %c0_14] : memref<8x1xf32, #tpu.memory_space<vmem>>, vector<8x1xf32>
    %24 = arith.mulf %11, %22 : vector<8x1xf32>
    %25 = arith.subf %23, %24 : vector<8x1xf32>
    %26 = vector.broadcast %22 : vector<8x1xf32> to vector<8x128xf32>
    %27 = arith.mulf %4, %26 : vector<8x128xf32>
    %28 = vector.broadcast %25 : vector<8x1xf32> to vector<8x128xf32>
    %29 = arith.addf %27, %28 : vector<8x128xf32>
    %cst_15 = arith.constant 0.000000e+00 : f32
    %30 = vector.broadcast %cst_15 : f32 to vector<8x128xf32>
    %31 = arith.cmpf oge, %29, %30 : vector<8x128xf32>
    %cst_16 = arith.constant 2.000000e-01 : f32
    %32 = vector.broadcast %cst_16 : f32 to vector<8x128xf32>
    %33 = arith.mulf %32, %29 : vector<8x128xf32>
    %34 = arith.select %31, %29, %33 : vector<8x128xi1>, vector<8x128xf32>
    %c0_17 = arith.constant 0 : index
    %c0_18 = arith.constant 0 : index
    %c0_19 = arith.constant 0 : index
    %35 = vector.load %arg5[%c0_17, %c0_18, %c0_19] : memref<1x8x128xf32, #tpu.memory_space<vmem>>, vector<1x8x128xf32>
    %36 = vector.shape_cast %35 : vector<1x8x128xf32> to vector<8x128xf32>
    %37 = vector.shape_cast %34 : vector<8x128xf32> to vector<1x8x128xf32>
    tpu.vector_store %arg5[%c0_17, %c0_18, %c0_19], %37 {strides = array<i32>} : memref<1x8x128xf32, #tpu.memory_space<vmem>>, vector<1x8x128xf32>,
    return
  }
  func.func @transform_0(%arg0: i32) -> (i32, i32, i32) {
    %c0_i32 = arith.constant 0 : i32
    %c0_i32_0 = arith.constant 0 : i32
    %c0_i32_1 = arith.constant 0 : i32
    %c0_i32_2 = arith.constant 0 : i32
    return %c0_i32, %c0_i32_0, %c0_i32_1 : i32, i32, i32
  }
  func.func @transform_1(%arg0: i32) -> (i32, i32, i32) {
    %c0_i32 = arith.constant 0 : i32
    %c0_i32_0 = arith.constant 0 : i32
    %c0_i32_1 = arith.constant 0 : i32
    %c0_i32_2 = arith.constant 0 : i32
    return %c0_i32, %c0_i32_0, %c0_i32_1 : i32, i32, i32
  }
  func.func @transform_2(%arg0: i32) -> (i32, i32) {
    %c0_i32 = arith.constant 0 : i32
    %c0_i32_0 = arith.constant 0 : i32
    %c0_i32_1 = arith.constant 0 : i32
    return %c0_i32, %c0_i32_0 : i32, i32
  }
  func.func @transform_3(%arg0: i32) -> (i32, i32) {
    %c0_i32 = arith.constant 0 : i32
    %c0_i32_0 = arith.constant 0 : i32
    %c0_i32_1 = arith.constant 0 : i32
    return %c0_i32, %c0_i32_0 : i32, i32
  }
  func.func @transform_4(%arg0: i32) -> (i32, i32, i32) {
    %c0_i32 = arith.constant 0 : i32
    %c0_i32_0 = arith.constant 0 : i32
    %c0_i32_1 = arith.constant 0 : i32
    %c0_i32_2 = arith.constant 0 : i32
    return %c0_i32, %c0_i32_0, %c0_i32_1 : i32, i32, i32
  }
}

</mosaic_0001>

<llo_original>
// kernel: tpu_custom_call.1
$region0: #{tpu_custom_call.1}
  #allocation0 [shape = 'u32[]', space=smem, size = 0x4, offset = 0x4, fixed_abs, tag = 'smem constant byte address 0x4 - core index']
  #allocation1 [shape = 'u32[144,128]{1,0:T(1,128)}', space=vmem, size = 0x12000, scoped, tag = 'internal scratch']
  %s0 = inlined_call_operand.hbm [shape: bf16[1,64,128], index: 0, kind: input, shape index: {}]
  %s1 = inlined_call_operand.vmem [shape: bf16[1,8,64], index: 1, kind: input, shape index: {}]
  %s2 = inlined_call_operand.vmem [shape: f32[8,1], index: 2, kind: input, shape index: {}]
  %s3 = inlined_call_operand.vmem [shape: f32[8,1], index: 3, kind: input, shape index: {}]
  %s4 = inlined_call_operand.hbm [shape: f32[1,8,128], index: 4, kind: output, shape index: {}]
  %s5 = sld [smem:[#allocation0]]
  $region30: #{tpu_custom_call.1} parent=0
    _
  %s7 = ssub.s32 1, %s5
  %s8 = scalar_select 0, %s7, %s5
  $region1: #{tpu_custom_call.1} parent=0
    #allocation2 [shape = 'u8[16384]{0}', space=vmem, size = 0x4000, scoped, tag = 'input window, operand 0, single buffered']
    #allocation3 [shape = 's32[1]{0}', space=sflag, size = 0x4, scoped, tag = 'scoped memory for tpu_custom_call.1']
    #allocation4 [shape = 's32[1]{0}', space=sflag, size = 0x4, scoped, tag = 'scoped memory for tpu_custom_call.1']
    #allocation5 [shape = 'u8[4096]{0}', space=vmem, size = 0x1000, scoped, tag = 'output window, operand 0, single buffered']
    %9 = vsyncpa [#allocation3], 0
    %10 = vsyncpa [#allocation4], 0
    // Predicated region
    $region2: #{tpu_custom_call.1} parent=1 // pred_check
      _
    $region3: #{tpu_custom_call.1} parent=1 // pred_check_branch
      %12 = sbr.rel (0) target = $region5
    $region4: #{tpu_custom_call.1} parent=1 // pred_region
      %s14 = ssub.s32 512, 512
      %15 = vsyncadd [#allocation3], %s14
      %s16 = sshll.u32 [#allocation2], 4
      %s17 = int_to_ptr.vmem [resolvable:$true] %s16
      %22 = dma.hbm_to_vmem [thread:$0]  %s0, 512, %s17, [#allocation3], 64, 64, 4
    $region5: #{tpu_custom_call.1} parent=1 // pred_fallthru
      _
    // Predicated region
    $region6: #{tpu_custom_call.1} parent=1 // pred_check
      _
    $region7: #{tpu_custom_call.1} parent=1 // pred_check_branch
      %24 = sbr.rel (0) target = $region9
    $region8: #{tpu_custom_call.1} parent=1 // pred_region
      _
    $region9: #{tpu_custom_call.1} parent=1 // pred_fallthru
      _
    // Predicated region
    $region10: #{tpu_custom_call.1} parent=1 // pred_check
      _
    $region11: #{tpu_custom_call.1} parent=1 // pred_check_branch
      %26 = sbr.rel (0) target = $region13
    $region12: #{tpu_custom_call.1} parent=1 // pred_region
      _
    $region13: #{tpu_custom_call.1} parent=1 // pred_fallthru
      _
    // Predicated region
    $region14: #{tpu_custom_call.1} parent=1 // pred_check
      _
    $region15: #{tpu_custom_call.1} parent=1 // pred_check_branch
      %28 = sbr.rel (0) target = $region17
    $region16: #{tpu_custom_call.1} parent=1 // pred_region
      _
    $region17: #{tpu_custom_call.1} parent=1 // pred_fallthru
      _
    // Predicated region
    $region18: #{tpu_custom_call.1} parent=1 // pred_check
      _
    $region19: #{tpu_custom_call.1} parent=1 // pred_check_branch
      %30 = sbr.rel (0) target = $region21
    $region20: #{tpu_custom_call.1} parent=1 // pred_region
      %31 = dma.done [#allocation3], 512
    $region21: #{tpu_custom_call.1} parent=1 // pred_fallthru
      _
    %v33 = vld [vmem:[%s1] sm:$0xf]
    %v34 = vld [vmem:[#allocation2] sm:$0xf]
    %v35 = vld [vmem:[#allocation2 + $0x4] sm:$0xf]
    %v36 = vld [vmem:[#allocation2 + $0x8] sm:$0xf]
    %v37 = vld [vmem:[#allocation2 + $0xc] sm:$0xf]
    %v38 = vld [vmem:[#allocation2 + $0x10] sm:$0xf]
    %v39 = vld [vmem:[#allocation2 + $0x14] sm:$0xf]
    %v40 = vld [vmem:[#allocation2 + $0x18] sm:$0xf]
    %v41 = vld [vmem:[#allocation2 + $0x1c] sm:$0xf]
    %v50 = vunpack.c.l.b16 %v34
    %v51 = vunpack.c.l.b16 %v35
    %v52 = vunpack.c.l.b16 %v36
    %v53 = vunpack.c.l.b16 %v37
    %v54 = vunpack.c.l.b16 %v38
    %v55 = vunpack.c.l.b16 %v39
    %v56 = vunpack.c.l.b16 %v40
    %v57 = vunpack.c.l.b16 %v41
    %v58 = vpack.c.b16 %v51, %v50
    %v59 = vpack.c.b16 %v53, %v52
    %v60 = vpack.c.b16 %v55, %v54
    %v61 = vpack.c.b16 %v57, %v56
    %vm66 = vcmask 523264
    %v68 = vsel %vm66, %v33, 0
    %70 = vmatprep.subr.bf16.mxu0 0
    %71 = vmatpush1.bf16.msra.mxu0 %v58
    %72 = vmatprep.subr.bf16.mxu0 0
    %73 = vmatpush1.bf16.msra.mxu0 %v59
    %74 = vmatprep.subr.bf16.mxu0 0
    %75 = vmatpush1.bf16.msra.mxu0 %v60
    %76 = vmatprep.subr.bf16.mxu0 0
    %77 = vmatpush1.bf16.msra.mxu0 %v61
    %78 = vmatprep.subr.bf16.mxu0 0
    %79 = vmatpush1.bf16.msra.mxu0 0
    %80 = vmatprep.subr.bf16.mxu0 0
    %81 = vmatpush1.bf16.msra.mxu0 0
    %82 = vmatprep.subr.bf16.mxu0 0
    %83 = vmatpush1.bf16.msra.mxu0 0
    %84 = vmatprep.subr.bf16.mxu0 0
    %85 = vmatpush1.bf16.msra.mxu0 0
    %86 = vmatprep.subr.bf16.mxu0 0
    %87 = vmatpush1.bf16.msra.mxu0 0
    %88 = vmatprep.subr.bf16.mxu0 0
    %89 = vmatpush1.bf16.msra.mxu0 0
    %90 = vmatprep.subr.bf16.mxu0 0
    %91 = vmatpush1.bf16.msra.mxu0 0
    %92 = vmatprep.subr.bf16.mxu0 0
    %93 = vmatpush1.bf16.msra.mxu0 0
    %94 = vmatprep.subr.bf16.mxu0 0
    %95 = vmatpush1.bf16.msra.mxu0 0
    %96 = vmatprep.subr.bf16.mxu0 0
    %97 = vmatpush1.bf16.msra.mxu0 0
    %98 = vmatprep.subr.bf16.mxu0 0
    %99 = vmatpush1.bf16.msra.mxu0 0
    %100 = vmatprep.subr.bf16.mxu0 0
    %101 = vmatpush1.bf16.msra.mxu0 0
    %102 = vmatprep.mubr.bf16.mxu0 0
    %103 = vmatmul.mubr.bf16.gmra.mrb[0].mxu0 %v68
    %v104 = vpop.f32.mrb[0].mxu0
    %v105 = vadd.f32 0.0, %v104
    %v106 = vpop.f32.mrb[0].mxu0
    %v107 = vpop.f32.mrb[0].mxu0
    %v108 = vpop.f32.mrb[0].mxu0
    %109 = vdwg.mxu0
    %110 = vadd.xlane.f32.xlu0 %v105
    %v111 = vpop.xlane.xlu0 %110
    %v112 = vmul.f32 %v105, %v105
    %113 = vadd.xlane.f32.xlu0 %v112
    %v114 = vpop.xlane.xlu0 %113
    %v115 = vrcp.pop 128.0
    %v116 = vmul.f32 %v111, %v115
    %v117 = vmul.f32 %v114, %v115
    %v118 = vmul.f32 %v116, %v116
    %v119 = vsub.f32 %v117, %v118
    %v120 = vmax.f32 %v119, 0.0
    %v121 = vld [vmem:[%s2] sm:$0xff]
    %v122 = vadd.f32 %v120, 0.8
    %v123 = vrsqrt.pop %v122
    %v124 = vmul.f32 %v121, %v123
    %v125 = vld [vmem:[%s3] sm:$0xff]
    %v126 = vmul.f32 %v116, %v124
    %v127 = vsub.f32 %v125, %v126
    %129 = vset.pattern.permute.xlu0 0
    %130 = vperm.xlu0 %129, %v124
    %v131 = vpop.permute.xlu0 %130
    %v133 = vmul.f32 %v105, %v131
    %135 = vset.pattern.permute.xlu0 0
    %136 = vperm.xlu0 %135, %v127
    %v137 = vpop.permute.xlu0 %136
    %v139 = vadd.f32 %v133, %v137
    %vm140 = vcmp.ge.f32.partialorder %v139, 0.0
    %v141 = vmul.f32 %v139, 0.2
    %v142 = vsel %vm140, %v139, %v141
    %143 = vst [vmem:[#allocation5] sm:$0xff] %v142
    // Predicated region
    $region22: #{tpu_custom_call.1} parent=1 // pred_check
      _
    $region23: #{tpu_custom_call.1} parent=1 // pred_check_branch
      %145 = sbr.rel (0) target = $region25
    $region24: #{tpu_custom_call.1} parent=1 // pred_region
      %s147 = ssub.s32 128, 128
      %148 = vsyncadd [#allocation4], %s147
      %s150 = sshll.u32 [#allocation5], 4
      %s151 = int_to_ptr.vmem [resolvable:$true] %s150
      %153 = dma.vmem_to_hbm [thread:$0]  %s151, 128, %s4, [#allocation4]
    $region25: #{tpu_custom_call.1} parent=1 // pred_fallthru
      _
    // Predicated region
    $region26: #{tpu_custom_call.1} parent=1 // pred_check
      _
    $region27: #{tpu_custom_call.1} parent=1 // pred_check_branch
      %155 = sbr.rel (0) target = $region29
    $region28: #{tpu_custom_call.1} parent=1 // pred_region
      %156 = dma.done [#allocation4], 128
    $region29: #{tpu_custom_call.1} parent=1 // pred_fallthru
      _
    %157 = vsyncpa [#allocation3], 1
    %158 = vsyncpa [#allocation4], 1

</llo_original>
